<compile_context>
chip_gen: v7x
topology: tpu7x:2x2x1
jax: 0.10.0
libtpu: 0.0.40
codegen_flags: <defaults>
</compile_context>

<pallas_src>
import functools

import jax
import jax.numpy as jnp
from jax.experimental import pallas as pl
from jax.experimental.pallas import tpu as pltpu


def _round_up(x: int, m: int) -> int:
    return ((x + m - 1) // m) * m


def _mlp_fused_kernel(x_ref, *refs, num_layers: int):
    """Fused forward. refs = (w1, b1, w2, b2, ..., wL, bL, out_ref).

    The hidden activation stays on-chip as a kernel value (never written to
    HBM between layers).
    """
    out_ref = refs[-1]
    h = x_ref[...]  # (tile_n, d_in), f32
    for li in range(num_layers):
        w_ref = refs[2 * li]       # (d_in_i, d_out_i) bf16, VMEM-resident
        b_ref = refs[2 * li + 1]   # (1, d_out_i) f32
        # bf16 operands into the MXU, f32 accumulation.
        h = jnp.dot(h.astype(jnp.bfloat16), w_ref[...],
                    preferred_element_type=jnp.float32)
        h = h + b_ref[...]
        if li < num_layers - 1:
            h = jnp.maximum(h, 0.0)
    out_ref[...] = h.astype(out_ref.dtype)


def _mlp_fused_pallas(x2d, weights_p, biases_p, tile_n):
    """x2d: (N_pad, D0) f32 (N_pad % tile_n == 0, D0 = true input dim);
    weights_p[i]: (Din_i, Dout_i) bf16 (Dout lane-padded);
    biases_p[i]: (1, Dout_i) f32."""
    num_layers = len(weights_p)
    n_pad, d0 = x2d.shape
    d_last = weights_p[-1].shape[1]
    grid = (n_pad // tile_n,)

    # x tile: last dim is the full (true) feature dim -> legal even if < 128.
    in_specs = [pl.BlockSpec((tile_n, d0), lambda i: (i, 0))]
    operands = [x2d]
    for w, b in zip(weights_p, biases_p):
        din, dout = w.shape
        # Full-array weight/bias blocks, constant index_map -> fetched once and
        # resident in VMEM. Buffered(1): no pointless double-buffer copy.
        in_specs.append(pl.BlockSpec((din, dout), lambda i: (0, 0),
                                     pipeline_mode=pl.Buffered(1)))
        in_specs.append(pl.BlockSpec((1, dout), lambda i: (0, 0),
                                     pipeline_mode=pl.Buffered(1)))
        operands.append(w)
        operands.append(b)

    # Lane-dense (128-multiple) output store; wrapper slices under the same jit.
    out_spec = pl.BlockSpec((tile_n, d_last), lambda i: (i, 0))

    # Explicit VMEM budget: resident weights (single-buffered) + bias +
    # double-buffered x/out tiles, with headroom. Capped under v7x's 64 MiB.
    resident_bytes = sum(int(w.size) * w.dtype.itemsize for w in weights_p)
    resident_bytes += sum(int(b.size) * b.dtype.itemsize for b in biases_p)
    stream_bytes = 2 * tile_n * d0 * x2d.dtype.itemsize \
        + 2 * tile_n * d_last * x2d.dtype.itemsize
    vmem_limit = max(32 * 1024 * 1024,
                     int(1.5 * (resident_bytes + stream_bytes)) + (4 << 20))
    vmem_limit = min(vmem_limit, 60 * 1024 * 1024)
    # TODO(synk): for large FFN dims (e.g. 2048x2048 on v7x, where even bf16
    # resident weights stress the 64 MiB VMEM) add a K/Dout grid axis with
    # (tk, tn) weight tiles + an f32 accumulator instead of resident weights.

    flops = sum(2 * n_pad * w.shape[0] * w.shape[1] for w in weights_p)
    bytes_accessed = (
        int(x2d.size) * x2d.dtype.itemsize
        + sum(int(w.size) * w.dtype.itemsize for w in weights_p)
        + sum(int(b.size) * b.dtype.itemsize for b in biases_p)
        + n_pad * d_last * x2d.dtype.itemsize
    )

    kernel = functools.partial(_mlp_fused_kernel, num_layers=num_layers)
    return pl.pallas_call(
        kernel,
        out_shape=jax.ShapeDtypeStruct((n_pad, d_last), x2d.dtype),
        grid_spec=pltpu.PrefetchScalarGridSpec(
            num_scalar_prefetch=0,
            grid=grid,
            in_specs=in_specs,
            out_specs=out_spec,
        ),
        compiler_params=pltpu.CompilerParams(
            # Row tiles are independent -> shard across TCs on v7x megacore.
            dimension_semantics=("parallel",),
            vmem_limit_bytes=vmem_limit,
        ),
        cost_estimate=pl.CostEstimate(
            flops=flops, transcendentals=0, bytes_accessed=bytes_accessed
        ),
    )(*operands)


def _mlp_forward(x, weights_p, biases_p, *, num_layers, output_dim, tile_target):
    """Full forward: row pad -> fused pallas kernel -> slice/reshape (one jit)."""
    lead_shape = x.shape[:-1]
    x2d = x.reshape(-1, x.shape[-1])
    n = x2d.shape[0]

    n_rup8 = _round_up(max(n, 1), 8)
    tile_n = min(tile_target, n_rup8)
    # Prefer >= 2 row tiles so both v7x TensorCores get work; neutral on
    # single-TC v5e/v6e.
    if (n_rup8 // tile_n) < 2 and n_rup8 >= 16:
        tile_n = _round_up(pl.cdiv(n_rup8, 2), 8)
    n_pad = _round_up(n, tile_n)

    # Pad rows only; feature dim keeps its true width (no wrapper feature pad).
    if n_pad != n:
        x2d = jnp.pad(x2d, ((0, n_pad - n), (0, 0)))

    out_p = _mlp_fused_pallas(x2d, weights_p, biases_p, tile_n)
    out = out_p[:n, :output_dim]
    return out.reshape(*lead_shape, output_dim)


class MLP:
    """Pallas equivalent of the PyTorch MLP (FFN). Forward = one fused kernel."""

    # Target rows per grid step (512 ~ 85% of HBM roofline per measured data;
    # multiple of 8 for f32 row tiles).
    TILE_N_TARGET = 512
    # Output-feature lane padding. Real DETR widths (256, 2048) are already
    # multiples of 256 so v6e's 256-wide MXU is naturally filled; 128 is the
    # minimum lane-dense unit and a perfect fit for v5e.
    LANE = 128

    def __init__(self, input_dim, hidden_dim, output_dim, num_layers, key):
        self.num_layers = num_layers
        self.input_dim = input_dim
        self.output_dim = output_dim

        h = [hidden_dim] * (num_layers - 1)
        dims_in = [input_dim] + h
        dims_out = h + [output_dim]

        self.weights = []    # true-shaped f32 params (reference / export)
        self.biases = []
        self._weights_p = [] # bf16, output dim zero-padded to 128 lanes,
                             # input dim matching the previous layer's padded output
        self._biases_p = []  # f32, output dim zero-padded
        prev_out_p = input_dim  # first layer's K is the TRUE input dim (no pad)
        for n_in, n_out in zip(dims_in, dims_out):
            kw, kb, key = jax.random.split(key, 3)
            bound = 1.0 / float(n_in) ** 0.5
            # weight stored [in, out] (transpose of torch's [out, in])
            w = jax.random.uniform(kw, (n_in, n_out), jnp.float32, -bound, bound)
            b = jax.random.uniform(kb, (1, n_out), jnp.float32, -bound, bound)
            self.weights.append(w)
            self.biases.append(b)

            n_in_p = prev_out_p
            n_out_p = _round_up(n_out, self.LANE)
            w_p = jnp.zeros((n_in_p, n_out_p), jnp.float32).at[:n_in, :n_out].set(w)
            b_p = jnp.zeros((1, n_out_p), jnp.float32).at[:, :n_out].set(b)
            self._weights_p.append(w_p.astype(jnp.bfloat16))
            self._biases_p.append(b_p)
            prev_out_p = n_out_p

        out_dim = output_dim
        tile_target = self.TILE_N_TARGET
        nl = num_layers
        self._forward = jax.jit(
            lambda x, wp, bp: _mlp_forward(
                x, wp, bp, num_layers=nl, output_dim=out_dim,
                tile_target=tile_target))

    def __call__(self, x):
        return self._forward(x, self._weights_p, self._biases_p)


def mlp_reference_bf16(x, weights_p, biases_p, output_dim, num_layers):
    """Pure-JAX reference replicating the kernel's bf16-MXU / f32-accumulate path."""
    lead_shape = x.shape[:-1]
    h = x.reshape(-1, x.shape[-1]).astype(jnp.float32)
    for i in range(num_layers):
        h = jnp.dot(h.astype(jnp.bfloat16), weights_p[i],
                    preferred_element_type=jnp.float32) + biases_p[i]
        if i < num_layers - 1:
            h = jnp.maximum(h, 0.0)
    return h[:, :output_dim].reshape(*lead_shape, output_dim)


if __name__ == "__main__":
    key = jax.random.PRNGKey(0)
    k_param, k_x = jax.random.split(key)

    # Small shapes consistent with the module (bbox-head style 3-layer MLP).
    # NOTE: at these toy sizes the kernel is launch/DMA-prologue bound; tune
    # tile_n / VMEM budget at real DETR sizes (hundreds-thousands of rows,
    # hidden 256-2048) before drawing performance conclusions.
    batch, seq = 2, 8
    input_dim, hidden_dim, output_dim, num_layers = 32, 32, 4, 3

    mlp = MLP(input_dim, hidden_dim, output_dim, num_layers, k_param)
    x = jax.random.normal(k_x, (batch, seq, input_dim), jnp.float32)

    out = mlp(x)
    out = jax.block_until_ready(out)

    ref = mlp_reference_bf16(x, mlp._weights_p, mlp._biases_p, output_dim,
                             num_layers)
    assert out.shape == (batch, seq, output_dim), out.shape
    assert jnp.allclose(out, ref, atol=2e-3, rtol=2e-3), (
        "mismatch vs bf16-path reference: "
        f"max abs diff {jnp.max(jnp.abs(out - ref))}")

    print("KERNEL_OK")
</pallas_src>

<mosaic_0001>
module attributes {stable_mosaic.version = 11 : i64} {
  func.func @_mlp_fused_kernel(%arg0: i32, %arg1: memref<8x32xf32, #tpu.memory_space<vmem>>, %arg2: memref<32x128xbf16, #tpu.memory_space<vmem>>, %arg3: memref<1x128xf32, #tpu.memory_space<vmem>>, %arg4: memref<128x128xbf16, #tpu.memory_space<vmem>>, %arg5: memref<1x128xf32, #tpu.memory_space<vmem>>, %arg6: memref<128x128xbf16, #tpu.memory_space<vmem>>, %arg7: memref<1x128xf32, #tpu.memory_space<vmem>>, %arg8: memref<8x128xf32, #tpu.memory_space<vmem>>) attributes {dimension_semantics = [#tpu.dimension_semantics<parallel>], iteration_bounds = array<i64: 2>, scalar_prefetch = 0 : i64, scratch_operands = 0 : i64, tpu.core_type = #tpu.core_type<tc>, window_params = [{transform_indices = @transform_0, window_bounds = array<i64: 8, 32>}, {pipeline_mode = #tpu.pipeline_mode<synchronous>, transform_indices = @transform_1, window_bounds = array<i64: 32, 128>}, {pipeline_mode = #tpu.pipeline_mode<synchronous>, transform_indices = @transform_2, window_bounds = array<i64: 1, 128>}, {pipeline_mode = #tpu.pipeline_mode<synchronous>, transform_indices = @transform_3, window_bounds = array<i64: 128, 128>}, {pipeline_mode = #tpu.pipeline_mode<synchronous>, transform_indices = @transform_4, window_bounds = array<i64: 1, 128>}, {pipeline_mode = #tpu.pipeline_mode<synchronous>, transform_indices = @transform_5, window_bounds = array<i64: 128, 128>}, {pipeline_mode = #tpu.pipeline_mode<synchronous>, transform_indices = @transform_6, window_bounds = array<i64: 1, 128>}, {transform_indices = @transform_7, window_bounds = array<i64: 8, 128>}]} {
    %c0 = arith.constant 0 : index
    %c0_0 = arith.constant 0 : index
    %0 = vector.load %arg1[%c0, %c0_0] : memref<8x32xf32, #tpu.memory_space<vmem>>, vector<8x32xf32>
    %1 = arith.truncf %0 : vector<8x32xf32> to vector<8x32xbf16>
    %c0_1 = arith.constant 0 : index
    %c0_2 = arith.constant 0 : index
    %2 = vector.load %arg2[%c0_1, %c0_2] : memref<32x128xbf16, #tpu.memory_space<vmem>>, vector<32x128xbf16>
    %cst = arith.constant dense<0.000000e+00> : vector<8x128xf32>
    %3 = tpu.matmul %1, %2, %cst {dimension_numbers = #tpu.dot_dimension_numbers<[1], [0], [0], [1], [0, 0, 1, 1], [], []>} : vector<8x32xbf16>, vector<32x128xbf16>, vector<8x128xf32> -> vector<8x128xf32>
    %c0_3 = arith.constant 0 : index
    %c0_4 = arith.constant 0 : index
    %4 = vector.load %arg3[%c0_3, %c0_4] : memref<1x128xf32, #tpu.memory_space<vmem>>, vector<1x128xf32>
    %5 = vector.broadcast %4 : vector<1x128xf32> to vector<8x128xf32>
    %6 = arith.addf %3, %5 : vector<8x128xf32>
    %cst_5 = arith.constant 0.000000e+00 : f32
    %7 = vector.broadcast %cst_5 : f32 to vector<8x128xf32>
    %8 = arith.maximumf %6, %7 : vector<8x128xf32>
    %9 = arith.truncf %8 : vector<8x128xf32> to vector<8x128xbf16>
    %c0_6 = arith.constant 0 : index
    %c0_7 = arith.constant 0 : index
    %10 = vector.load %arg4[%c0_6, %c0_7] : memref<128x128xbf16, #tpu.memory_space<vmem>>, vector<128x128xbf16>
    %cst_8 = arith.constant dense<0.000000e+00> : vector<8x128xf32>
    %11 = tpu.matmul %9, %10, %cst_8 {dimension_numbers = #tpu.dot_dimension_numbers<[1], [0], [0], [1], [0, 0, 1, 1], [], []>} : vector<8x128xbf16>, vector<128x128xbf16>, vector<8x128xf32> -> vector<8x128xf32>
    %c0_9 = arith.constant 0 : index
    %c0_10 = arith.constant 0 : index
    %12 = vector.load %arg5[%c0_9, %c0_10] : memref<1x128xf32, #tpu.memory_space<vmem>>, vector<1x128xf32>
    %13 = vector.broadcast %12 : vector<1x128xf32> to vector<8x128xf32>
    %14 = arith.addf %11, %13 : vector<8x128xf32>
    %cst_11 = arith.constant 0.000000e+00 : f32
    %15 = vector.broadcast %cst_11 : f32 to vector<8x128xf32>
    %16 = arith.maximumf %14, %15 : vector<8x128xf32>
    %17 = arith.truncf %16 : vector<8x128xf32> to vector<8x128xbf16>
    %c0_12 = arith.constant 0 : index
    %c0_13 = arith.constant 0 : index
    %18 = vector.load %arg6[%c0_12, %c0_13] : memref<128x128xbf16, #tpu.memory_space<vmem>>, vector<128x128xbf16>
    %cst_14 = arith.constant dense<0.000000e+00> : vector<8x128xf32>
    %19 = tpu.matmul %17, %18, %cst_14 {dimension_numbers = #tpu.dot_dimension_numbers<[1], [0], [0], [1], [0, 0, 1, 1], [], []>} : vector<8x128xbf16>, vector<128x128xbf16>, vector<8x128xf32> -> vector<8x128xf32>
    %c0_15 = arith.constant 0 : index
    %c0_16 = arith.constant 0 : index
    %20 = vector.load %arg7[%c0_15, %c0_16] : memref<1x128xf32, #tpu.memory_space<vmem>>, vector<1x128xf32>
    %21 = vector.broadcast %20 : vector<1x128xf32> to vector<8x128xf32>
    %22 = arith.addf %19, %21 : vector<8x128xf32>
    %c0_17 = arith.constant 0 : index
    %c0_18 = arith.constant 0 : index
    %23 = vector.load %arg8[%c0_17, %c0_18] : memref<8x128xf32, #tpu.memory_space<vmem>>, vector<8x128xf32>
    tpu.vector_store %arg8[%c0_17, %c0_18], %22 {strides = array<i32>} : memref<8x128xf32, #tpu.memory_space<vmem>>, vector<8x128xf32>,
    return
  }
  func.func @transform_0(%arg0: i32) -> (i32, i32) {
    %c0_i32 = arith.constant 0 : i32
    %c0_i32_0 = arith.constant 0 : i32
    return %arg0, %c0_i32 : i32, i32
  }
  func.func @transform_1(%arg0: i32) -> (i32, i32) {
    %c0_i32 = arith.constant 0 : i32
    %c0_i32_0 = arith.constant 0 : i32
    %c0_i32_1 = arith.constant 0 : i32
    return %c0_i32, %c0_i32_0 : i32, i32
  }
  func.func @transform_2(%arg0: i32) -> (i32, i32) {
    %c0_i32 = arith.constant 0 : i32
    %c0_i32_0 = arith.constant 0 : i32
    %c0_i32_1 = arith.constant 0 : i32
    return %c0_i32, %c0_i32_0 : i32, i32
  }
  func.func @transform_3(%arg0: i32) -> (i32, i32) {
    %c0_i32 = arith.constant 0 : i32
    %c0_i32_0 = arith.constant 0 : i32
    %c0_i32_1 = arith.constant 0 : i32
    return %c0_i32, %c0_i32_0 : i32, i32
  }
  func.func @transform_4(%arg0: i32) -> (i32, i32) {
    %c0_i32 = arith.constant 0 : i32
    %c0_i32_0 = arith.constant 0 : i32
    %c0_i32_1 = arith.constant 0 : i32
    return %c0_i32, %c0_i32_0 : i32, i32
  }
  func.func @transform_5(%arg0: i32) -> (i32, i32) {
    %c0_i32 = arith.constant 0 : i32
    %c0_i32_0 = arith.constant 0 : i32
    %c0_i32_1 = arith.constant 0 : i32
    return %c0_i32, %c0_i32_0 : i32, i32
  }
  func.func @transform_6(%arg0: i32) -> (i32, i32) {
    %c0_i32 = arith.constant 0 : i32
    %c0_i32_0 = arith.constant 0 : i32
    %c0_i32_1 = arith.constant 0 : i32
    return %c0_i32, %c0_i32_0 : i32, i32
  }
  func.func @transform_7(%arg0: i32) -> (i32, i32) {
    %c0_i32 = arith.constant 0 : i32
    %c0_i32_0 = arith.constant 0 : i32
    return %arg0, %c0_i32 : i32, i32
  }
}

</mosaic_0001>

<llo_original>
// kernel: _lambda_.1
$region0: #{_lambda_.1}
  #allocation0 [shape = 'u32[]', space=smem, size = 0x4, offset = 0x4, fixed_abs, tag = 'smem constant byte address 0x4 - core index']
  #allocation1 [shape = 'u32[144,128]{1,0:T(1,128)}', space=vmem, size = 0x12000, scoped, tag = 'internal scratch']
  %s0 = inlined_call_operand.hbm [shape: f32[16,32], index: 0, kind: input, shape index: {}]
  %s1 = inlined_call_operand.hbm [shape: bf16[32,128], index: 1, kind: input, shape index: {}]
  %s2 = inlined_call_operand.vmem [shape: f32[1,128], index: 2, kind: input, shape index: {}]
  %s3 = inlined_call_operand.hbm [shape: bf16[128,128], index: 3, kind: input, shape index: {}]
  %s4 = inlined_call_operand.vmem [shape: f32[1,128], index: 4, kind: input, shape index: {}]
  %s5 = inlined_call_operand.hbm [shape: bf16[128,128], index: 5, kind: input, shape index: {}]
  %s6 = inlined_call_operand.vmem [shape: f32[1,128], index: 6, kind: input, shape index: {}]
  %s7 = inlined_call_operand.vmem [shape: f32[16,128], index: 7, kind: output, shape index: {}]
  %s8 = sld [smem:[#allocation0]]
  $region77: #{_lambda_.1} parent=0
    _
  %s10 = ssub.s32 1, %s8
  %s11 = scalar_select 0, %s10, %s8
  $region1: #{_lambda_.1} parent=0
    #allocation2 [shape = 'u8[8192]{0}', space=vmem, size = 0x2000, scoped, tag = 'input window, operand 0']
    #allocation3 [shape = 's32[2]{0}', space=sflag, size = 0x8, scoped, tag = 'scoped memory for _lambda_.1']
    #allocation4 [shape = 'u8[8192]{0}', space=vmem, size = 0x2000, scoped, tag = 'input window, operand 1, single buffered']
    #allocation5 [shape = 's32[1]{0}', space=sflag, size = 0x4, scoped, tag = 'scoped memory for _lambda_.1']
    #allocation6 [shape = 'u8[32768]{0}', space=vmem, size = 0x8000, scoped, tag = 'input window, operand 3, single buffered']
    #allocation7 [shape = 'u8[32768]{0}', space=vmem, size = 0x8000, scoped, tag = 'input window, operand 5, single buffered']
    #allocation8 [shape = 's32[1]{0}', space=sflag, size = 0x4, scoped, tag = 'scoped memory for _lambda_.1']
    %12 = vsyncpa [#allocation3], 0
    %s13 = scalar_lea.sflag [#allocation3], 1
    %14 = vsyncpa %s13, 0
    %15 = vsyncpa [#allocation5], 0
    %16 = vsyncpa [#allocation8], 0
    loop: start=0, step=1, limit=4
    $region2: #{_lambda_.1} parent=1 // loop_pre_header
      _
    $region3: #{_lambda_.1} parent=1 // loop_header
      %s18 = sphi 0, %s22
      %p19 = scmp.ge.s32.totalorder %s18, 4
      %s28 = sphi 0, %s30
      %s31 = sphi 0, %s28
      %s32 = sphi 0, %s31
      %s48 = sphi 0, %s32
      %s52 = sphi 0, %s52
      %s54 = sphi 0, %s52
      %s55 = sphi 0, %s54
      %s69 = sphi 0, %s55
      %s73 = sphi 0, %s73
      %s75 = sphi 0, %s73
      %s76 = sphi 0, %s75
      %s90 = sphi 0, %s76
      %s94 = sphi 0, %s94
      %s96 = sphi 0, %s94
      %s97 = sphi 0, %s96
      %s111 = sphi 0, %s97
      %s115 = sphi 0, %s115
      %s117 = sphi 0, %s115
      %s118 = sphi 0, %s117
      %s132 = sphi 0, %s118
      %s136 = sphi 0, %s136
      %s138 = sphi 0, %s136
      %s139 = sphi 0, %s138
      %s153 = sphi 0, %s139
      %s157 = sphi 0, %s157
      %s159 = sphi 0, %s157
      %s160 = sphi 0, %s159
      %s174 = sphi 0, %s160
      %s180 = sphi 0, %s182
      %s183 = sphi 0, %s180
      %s184 = sphi 0, %s183
      %s200 = sphi 0, %s184
    $region4: #{_lambda_.1} parent=1 // loop_header_branch
      %21 = sbr.rel (%p19) target = $region8
    $region5: #{_lambda_.1} parent=1 // loop_body
      %s23 = ssub.s32 %s18, 1
      %s24 = ssub.s32 %s18, 2
      %s25 = sadd.s32 %s18, 1
      %s26 = ssub.s32 %s18, %s25
      %p27 = scmp.eq.s32.totalorder %s26, 0
      %s29 = sadd.s32 %s28, 1
      %s30 = scalar_select %p27, %s28, %s29
      %p33 = pneg %p27
      %p34 = scmp.eq.s32.totalorder %s18, 1
      %p35 = por %p33, %p34
      %p36 = scmp.ne.s32.totalorder %s28, %s31
      %p37 = scmp.eq.s32.totalorder %s18, 0
      %p38 = por %p36, %p37
      %p39 = scmp.ne.s32.totalorder %s28, %s31
      %p40 = scmp.eq.s32.totalorder %s23, 1
      %p41 = por %p39, %p40
      %p42 = scmp.ne.s32.totalorder %s31, %s32
      %p43 = scmp.eq.s32.totalorder %s23, 0
      %p44 = por %p42, %p43
      %p45 = scmp.ne.s32.totalorder %s31, %s32
      %p46 = scmp.eq.s32.totalorder %s24, 1
      %p47 = por %p45, %p46
      %p49 = scmp.ne.s32.totalorder %s32, %s48
      %p50 = scmp.eq.s32.totalorder %s24, 0
      %p51 = por %p49, %p50
      %s53 = sadd.s32 %s52, 1
      %p56 = scmp.eq.s32.totalorder %s18, 1
      %p57 = scmp.ne.s32.totalorder %s52, %s54
      %p58 = scmp.eq.s32.totalorder %s18, 0
      %p59 = por %p57, %p58
      %p60 = scmp.ne.s32.totalorder %s52, %s54
      %p61 = scmp.eq.s32.totalorder %s23, 1
      %p62 = por %p60, %p61
      %p63 = scmp.ne.s32.totalorder %s54, %s55
      %p64 = scmp.eq.s32.totalorder %s23, 0
      %p65 = por %p63, %p64
      %p66 = scmp.ne.s32.totalorder %s54, %s55
      %p67 = scmp.eq.s32.totalorder %s24, 1
      %p68 = por %p66, %p67
      %p70 = scmp.ne.s32.totalorder %s55, %s69
      %p71 = scmp.eq.s32.totalorder %s24, 0
      %p72 = por %p70, %p71
      %s74 = sadd.s32 %s73, 1
      %p77 = scmp.eq.s32.totalorder %s18, 1
      %p78 = scmp.ne.s32.totalorder %s73, %s75
      %p79 = scmp.eq.s32.totalorder %s18, 0
      %p80 = por %p78, %p79
      %p81 = scmp.ne.s32.totalorder %s73, %s75
      %p82 = scmp.eq.s32.totalorder %s23, 1
      %p83 = por %p81, %p82
      %p84 = scmp.ne.s32.totalorder %s75, %s76
      %p85 = scmp.eq.s32.totalorder %s23, 0
      %p86 = por %p84, %p85
      %p87 = scmp.ne.s32.totalorder %s75, %s76
      %p88 = scmp.eq.s32.totalorder %s24, 1
      %p89 = por %p87, %p88
      %p91 = scmp.ne.s32.totalorder %s76, %s90
      %p92 = scmp.eq.s32.totalorder %s24, 0
      %p93 = por %p91, %p92
      %s95 = sadd.s32 %s94, 1
      %p98 = scmp.eq.s32.totalorder %s18, 1
      %p99 = scmp.ne.s32.totalorder %s94, %s96
      %p100 = scmp.eq.s32.totalorder %s18, 0
      %p101 = por %p99, %p100
      %p102 = scmp.ne.s32.totalorder %s94, %s96
      %p103 = scmp.eq.s32.totalorder %s23, 1
      %p104 = por %p102, %p103
      %p105 = scmp.ne.s32.totalorder %s96, %s97
      %p106 = scmp.eq.s32.totalorder %s23, 0
      %p107 = por %p105, %p106
      %p108 = scmp.ne.s32.totalorder %s96, %s97
      %p109 = scmp.eq.s32.totalorder %s24, 1
      %p110 = por %p108, %p109
      %p112 = scmp.ne.s32.totalorder %s97, %s111
      %p113 = scmp.eq.s32.totalorder %s24, 0
      %p114 = por %p112, %p113
      %s116 = sadd.s32 %s115, 1
      %p119 = scmp.eq.s32.totalorder %s18, 1
      %p120 = scmp.ne.s32.totalorder %s115, %s117
      %p121 = scmp.eq.s32.totalorder %s18, 0
      %p122 = por %p120, %p121
      %p123 = scmp.ne.s32.totalorder %s115, %s117
      %p124 = scmp.eq.s32.totalorder %s23, 1
      %p125 = por %p123, %p124
      %p126 = scmp.ne.s32.totalorder %s117, %s118
      %p127 = scmp.eq.s32.totalorder %s23, 0
      %p128 = por %p126, %p127
      %p129 = scmp.ne.s32.totalorder %s117, %s118
      %p130 = scmp.eq.s32.totalorder %s24, 1
      %p131 = por %p129, %p130
      %p133 = scmp.ne.s32.totalorder %s118, %s132
      %p134 = scmp.eq.s32.totalorder %s24, 0
      %p135 = por %p133, %p134
      %s137 = sadd.s32 %s136, 1
      %p140 = scmp.eq.s32.totalorder %s18, 1
      %p141 = scmp.ne.s32.totalorder %s136, %s138
      %p142 = scmp.eq.s32.totalorder %s18, 0
      %p143 = por %p141, %p142
      %p144 = scmp.ne.s32.totalorder %s136, %s138
      %p145 = scmp.eq.s32.totalorder %s23, 1
      %p146 = por %p144, %p145
      %p147 = scmp.ne.s32.totalorder %s138, %s139
      %p148 = scmp.eq.s32.totalorder %s23, 0
      %p149 = por %p147, %p148
      %p150 = scmp.ne.s32.totalorder %s138, %s139
      %p151 = scmp.eq.s32.totalorder %s24, 1
      %p152 = por %p150, %p151
      %p154 = scmp.ne.s32.totalorder %s139, %s153
      %p155 = scmp.eq.s32.totalorder %s24, 0
      %p156 = por %p154, %p155
      %s158 = sadd.s32 %s157, 1
      %p161 = scmp.eq.s32.totalorder %s18, 1
      %p162 = scmp.ne.s32.totalorder %s157, %s159
      %p163 = scmp.eq.s32.totalorder %s18, 0
      %p164 = por %p162, %p163
      %p165 = scmp.ne.s32.totalorder %s157, %s159
      %p166 = scmp.eq.s32.totalorder %s23, 1
      %p167 = por %p165, %p166
      %p168 = scmp.ne.s32.totalorder %s159, %s160
      %p169 = scmp.eq.s32.totalorder %s23, 0
      %p170 = por %p168, %p169
      %p171 = scmp.ne.s32.totalorder %s159, %s160
      %p172 = scmp.eq.s32.totalorder %s24, 1
      %p173 = por %p171, %p172
      %p175 = scmp.ne.s32.totalorder %s160, %s174
      %p176 = scmp.eq.s32.totalorder %s24, 0
      %p177 = por %p175, %p176
      %s178 = ssub.s32 %s18, %s25
      %p179 = scmp.eq.s32.totalorder %s178, 0
      %s181 = sadd.s32 %s180, 1
      %s182 = scalar_select %p179, %s180, %s181
      %p185 = pneg %p179
      %p186 = scmp.eq.s32.totalorder %s18, 1
      %p187 = por %p185, %p186
      %p188 = scmp.ne.s32.totalorder %s180, %s183
      %p189 = scmp.eq.s32.totalorder %s18, 0
      %p190 = por %p188, %p189
      %p191 = scmp.ne.s32.totalorder %s180, %s183
      %p192 = scmp.eq.s32.totalorder %s23, 1
      %p193 = por %p191, %p192
      %p194 = scmp.ne.s32.totalorder %s183, %s184
      %p195 = scmp.eq.s32.totalorder %s23, 0
      %p196 = por %p194, %p195
      %p197 = scmp.ne.s32.totalorder %s183, %s184
      %p198 = scmp.eq.s32.totalorder %s24, 1
      %p199 = por %p197, %p198
      %p201 = scmp.ne.s32.totalorder %s184, %s200
      %p202 = scmp.eq.s32.totalorder %s24, 0
      %p203 = por %p201, %p202
      %p204 = scmp.le.s32.totalorder 1, %s18
      %p205 = scmp.lt.s32.totalorder %s18, 3
      %p206 = pnand %p204, %p205
      %p207 = pneg %p206
      // Predicated region
      $region9: #{_lambda_.1} parent=5 // pred_check
        _
      $region10: #{_lambda_.1} parent=5 // pred_check_branch
        %209 = sbr.rel (%p206) target = $region12
      $region11: #{_lambda_.1} parent=5 // pred_region
        %s210 = ssub.s32 %s18, 1
        // Predicated region
        $region13: #{_lambda_.1} parent=11 // pred_check
          %p211 = pneg %p65
        $region14: #{_lambda_.1} parent=11 // pred_check_branch
          %213 = sbr.rel (%p211) target = $region16
        $region15: #{_lambda_.1} parent=11 // pred_region
          %s215 = ssub.s32 256, 256
          %216 = vsyncadd [#allocation5], %s215
          %s217 = sshll.u32 [#allocation4], 4
          %s218 = int_to_ptr.vmem [resolvable:$true] %s217
          %223 = dma.hbm_to_vmem [thread:$0]  %s1, 256, %s218, [#allocation5], 64, 64, 4
        $region16: #{_lambda_.1} parent=11 // pred_fallthru
          _
        // Predicated region
        $region17: #{_lambda_.1} parent=11 // pred_check
          %p224 = pneg %p86
        $region18: #{_lambda_.1} parent=11 // pred_check_branch
          %226 = sbr.rel (%p224) target = $region20
        $region19: #{_lambda_.1} parent=11 // pred_region
          _
        $region20: #{_lambda_.1} parent=11 // pred_fallthru
          _
        // Predicated region
        $region21: #{_lambda_.1} parent=11 // pred_check
          %p227 = pneg %p107
        $region22: #{_lambda_.1} parent=11 // pred_check_branch
          %229 = sbr.rel (%p227) target = $region24
        $region23: #{_lambda_.1} parent=11 // pred_region
          %s231 = ssub.s32 1024, 1024
          %232 = vsyncadd [#allocation5], %s231
          %s233 = sshll.u32 [#allocation6], 4
          %s234 = int_to_ptr.vmem [resolvable:$true] %s233
          %239 = dma.hbm_to_vmem [thread:$0]  %s3, 1024, %s234, [#allocation5], 64, 64, 4
        $region24: #{_lambda_.1} parent=11 // pred_fallthru
          _
        // Predicated region
        $region25: #{_lambda_.1} parent=11 // pred_check
          %p240 = pneg %p128
        $region26: #{_lambda_.1} parent=11 // pred_check_branch
          %242 = sbr.rel (%p240) target = $region28
        $region27: #{_lambda_.1} parent=11 // pred_region
          _
        $region28: #{_lambda_.1} parent=11 // pred_fallthru
          _
        // Predicated region
        $region29: #{_lambda_.1} parent=11 // pred_check
          %p243 = pneg %p149
        $region30: #{_lambda_.1} parent=11 // pred_check_branch
          %245 = sbr.rel (%p243) target = $region32
        $region31: #{_lambda_.1} parent=11 // pred_region
          %s247 = ssub.s32 1024, 1024
          %248 = vsyncadd [#allocation8], %s247
          %s249 = sshll.u32 [#allocation7], 4
          %s250 = int_to_ptr.vmem [resolvable:$true] %s249
          %255 = dma.hbm_to_vmem [thread:$0]  %s5, 1024, %s250, [#allocation8], 64, 64, 4
        $region32: #{_lambda_.1} parent=11 // pred_fallthru
          _
        // Predicated region
        $region33: #{_lambda_.1} parent=11 // pred_check
          %p256 = pneg %p170
        $region34: #{_lambda_.1} parent=11 // pred_check_branch
          %258 = sbr.rel (%p256) target = $region36
        $region35: #{_lambda_.1} parent=11 // pred_region
          _
        $region36: #{_lambda_.1} parent=11 // pred_fallthru
          _
      $region12: #{_lambda_.1} parent=5 // pred_fallthru
        _
      %p259 = scmp.lt.s32.totalorder %s18, 2
      // Predicated region
      $region37: #{_lambda_.1} parent=5 // pred_check
        %p260 = pneg %p259
      $region38: #{_lambda_.1} parent=5 // pred_check_branch
        %262 = sbr.rel (%p260) target = $region40
      $region39: #{_lambda_.1} parent=5 // pred_region
        // Predicated region
        $region41: #{_lambda_.1} parent=39 // pred_check
          %p263 = pneg %p38
        $region42: #{_lambda_.1} parent=39 // pred_check_branch
          %265 = sbr.rel (%p263) target = $region44
        $region43: #{_lambda_.1} parent=39 // pred_region
          %s266 = sand.u32 %s28, 1
          %s267 = scalar_lea.sflag [#allocation3], %s266
          %s268 = sand.u32 %s28, 1
          %s269 = smul.addr %s268, 8
          %s270 = scalar_lea.vmem [#allocation2], %s269
          %s272 = ssub.s32 128, 128
          %273 = vsyncadd %s267, %s272
          %s274 = smul.addr %s18, 128
          %s275 = scalar_lea.hbm %s0, %s274
          %s277 = sshll.u32 %s270, 4
          %s278 = int_to_ptr.vmem [resolvable:$true] %s277
          %280 = dma.hbm_to_vmem [thread:$0]  %s275, 128, %s278, %s267
        $region44: #{_lambda_.1} parent=39 // pred_fallthru
          _
      $region40: #{_lambda_.1} parent=5 // pred_fallthru
        _
      %p281 = scmp.le.s32.totalorder 1, %s18
      %p282 = scmp.lt.s32.totalorder %s18, 3
      %p283 = pnand %p281, %p282
      %p284 = pneg %p283
      // Predicated region
      $region45: #{_lambda_.1} parent=5 // pred_check
        _
      $region46: #{_lambda_.1} parent=5 // pred_check_branch
        %286 = sbr.rel (%p283) target = $region48
      $region47: #{_lambda_.1} parent=5 // pred_region
        %s287 = ssub.s32 %s18, 1
        %s288 = sand.u32 %s31, 1
        %s289 = scalar_lea.sflag [#allocation3], %s288
        %s290 = sand.u32 %s31, 1
        %s291 = smul.addr %s290, 8
        %s292 = scalar_lea.vmem [#allocation2], %s291
        // Predicated region
        $region49: #{_lambda_.1} parent=47 // pred_check
          %p293 = pneg %p44
        $region50: #{_lambda_.1} parent=47 // pred_check_branch
          %295 = sbr.rel (%p293) target = $region52
        $region51: #{_lambda_.1} parent=47 // pred_region
          %296 = dma.done %s289, 128
        $region52: #{_lambda_.1} parent=47 // pred_fallthru
          _
        // Predicated region
        $region53: #{_lambda_.1} parent=47 // pred_check
          %p297 = pneg %p65
        $region54: #{_lambda_.1} parent=47 // pred_check_branch
          %299 = sbr.rel (%p297) target = $region56
        $region55: #{_lambda_.1} parent=47 // pred_region
          %300 = dma.done [#allocation5], 256
        $region56: #{_lambda_.1} parent=47 // pred_fallthru
          _
        // Predicated region
        $region57: #{_lambda_.1} parent=47 // pred_check
          %p301 = pneg %p107
        $region58: #{_lambda_.1} parent=47 // pred_check_branch
          %303 = sbr.rel (%p301) target = $region60
        $region59: #{_lambda_.1} parent=47 // pred_region
          %304 = dma.done [#allocation5], 1024
        $region60: #{_lambda_.1} parent=47 // pred_fallthru
          _
        // Predicated region
        $region61: #{_lambda_.1} parent=47 // pred_check
          %p305 = pneg %p149
        $region62: #{_lambda_.1} parent=47 // pred_check_branch
          %307 = sbr.rel (%p305) target = $region64
        $region63: #{_lambda_.1} parent=47 // pred_region
          %308 = dma.done [#allocation8], 1024
        $region64: #{_lambda_.1} parent=47 // pred_fallthru
          _
        %s309 = sand.u32 %s31, 1
        %s310 = scalar_lea.sflag [#allocation3], %s309
        %s311 = sand.u32 %s31, 1
        %s312 = smul.addr %s311, 8
        %s313 = scalar_lea.vmem [#allocation2], %s312
        %p314 = pneg %p44
        %p315 = pneg %p41
        %p316 = pneg %p65
        %p317 = pneg %p62
        %p318 = pneg %p86
        %p319 = pneg %p83
        %p320 = pneg %p107
        %p321 = pneg %p104
        %p322 = pneg %p128
        %p323 = pneg %p125
        %p324 = pneg %p149
        %p325 = pneg %p146
        %p326 = pneg %p170
        %p327 = pneg %p167
        %p328 = pneg %p196
        %p329 = pneg %p193
        %p330 = scmp.lt.s32.totalorder %s23, 1
        %s331 = scalar_select %p330, %s23, 1
        %s332 = smul.addr %s331, 8
        %s333 = scalar_lea.vmem %s7, %s332
        %p334 = scmp.lt.s32.totalorder %s23, 1
        %s335 = scalar_select %p334, %s23, 1
        %s336 = smul.addr %s335, 8
        %s337 = scalar_lea.vmem %s7, %s336
        %v339 = vld [vmem:[%s292] sm:$0xff]
        %v340 = vpack.c.bf16 %v339, %v339
        %v341 = vld [vmem:[#allocation4] sm:$0xf]
        %v342 = vld [vmem:[#allocation4 + $0x4] sm:$0xf]
        %v343 = vld [vmem:[#allocation4 + $0x8] sm:$0xf]
        %v344 = vld [vmem:[#allocation4 + $0xc] sm:$0xf]
        %v345 = vld [vmem:[%s2] sm:$0x1]
        %v347 = vlaneseq
        %v348 = vshrl.u32 %v347, 7
        %v349 = vsub.s32 0, %v348
        %v350 = vrot.slane %v345, %v349
        %v356 = vunpack.c.l.b16 %v341
        %v357 = vunpack.c.l.b16 %v342
        %v358 = vunpack.c.l.b16 %v343
        %v359 = vunpack.c.l.b16 %v344
        %v360 = vpack.c.b16 %v357, %v356
        %v361 = vpack.c.b16 %v359, %v358
        %vm364 = vcmask 261120
        %v366 = vsel %vm364, %v340, 0
        %368 = vmatprep.subr.bf16.mxu0 0
        %369 = vmatpush1.bf16.msra.mxu0 %v360
        %370 = vmatprep.subr.bf16.mxu0 0
        %371 = vmatpush1.bf16.msra.mxu0 %v361
        %372 = vmatprep.subr.bf16.mxu0 0
        %373 = vmatpush1.bf16.msra.mxu0 0
        %374 = vmatprep.subr.bf16.mxu0 0
        %375 = vmatpush1.bf16.msra.mxu0 0
        %376 = vmatprep.subr.bf16.mxu0 0
        %377 = vmatpush1.bf16.msra.mxu0 0
        %378 = vmatprep.subr.bf16.mxu0 0
        %379 = vmatpush1.bf16.msra.mxu0 0
        %380 = vmatprep.subr.bf16.mxu0 0
        %381 = vmatpush1.bf16.msra.mxu0 0
        %382 = vmatprep.subr.bf16.mxu0 0
        %383 = vmatpush1.bf16.msra.mxu0 0
        %384 = vmatprep.subr.bf16.mxu0 0
        %385 = vmatpush1.bf16.msra.mxu0 0
        %386 = vmatprep.subr.bf16.mxu0 0
        %387 = vmatpush1.bf16.msra.mxu0 0
        %388 = vmatprep.subr.bf16.mxu0 0
        %389 = vmatpush1.bf16.msra.mxu0 0
        %390 = vmatprep.subr.bf16.mxu0 0
        %391 = vmatpush1.bf16.msra.mxu0 0
        %392 = vmatprep.subr.bf16.mxu0 0
        %393 = vmatpush1.bf16.msra.mxu0 0
        %394 = vmatprep.subr.bf16.mxu0 0
        %395 = vmatpush1.bf16.msra.mxu0 0
        %396 = vmatprep.subr.bf16.mxu0 0
        %397 = vmatpush1.bf16.msra.mxu0 0
        %398 = vmatprep.subr.bf16.mxu0 0
        %399 = vmatpush1.bf16.msra.mxu0 0
        %400 = vmatprep.mubr.bf16.mxu0 0
        %401 = vmatmul.mubr.bf16.gmra.mrb[0].mxu0 %v366
        %v402 = vpop.f32.mrb[0].mxu0
        %v403 = vadd.f32 %v350, %v402
        %v404 = vpop.f32.mrb[0].mxu0
        %v405 = vpop.f32.mrb[0].mxu0
        %v406 = vpop.f32.mrb[0].mxu0
        %407 = vdwg.mxu0
        %v408 = vmax.f32 %v403, 0.0
        %v409 = vpack.c.bf16 %v408, %v408
        %v410 = vld [vmem:[#allocation6] sm:$0xf]
        %v411 = vld [vmem:[#allocation6 + $0x4] sm:$0xf]
        %v412 = vld [vmem:[#allocation6 + $0x8] sm:$0xf]
        %v413 = vld [vmem:[#allocation6 + $0xc] sm:$0xf]
        %v414 = vld [vmem:[#allocation6 + $0x10] sm:$0xf]
        %v415 = vld [vmem:[#allocation6 + $0x14] sm:$0xf]
        %v416 = vld [vmem:[#allocation6 + $0x18] sm:$0xf]
        %v417 = vld [vmem:[#allocation6 + $0x1c] sm:$0xf]
        %v418 = vld [vmem:[#allocation6 + $0x20] sm:$0xf]
        %v419 = vld [vmem:[#allocation6 + $0x24] sm:$0xf]
        %v420 = vld [vmem:[#allocation6 + $0x28] sm:$0xf]
        %v421 = vld [vmem:[#allocation6 + $0x2c] sm:$0xf]
        %v422 = vld [vmem:[#allocation6 + $0x30] sm:$0xf]
        %v423 = vld [vmem:[#allocation6 + $0x34] sm:$0xf]
        %v424 = vld [vmem:[#allocation6 + $0x38] sm:$0xf]
        %v425 = vld [vmem:[#allocation6 + $0x3c] sm:$0xf]
        %v426 = vld [vmem:[%s4] sm:$0x1]
        %v428 = vlaneseq
        %v429 = vshrl.u32 %v428, 7
        %v430 = vsub.s32 0, %v429
        %v431 = vrot.slane %v426, %v430
        %v449 = vunpack.c.l.b16 %v410
        %v450 = vunpack.c.l.b16 %v411
        %v451 = vunpack.c.l.b16 %v412
        %v452 = vunpack.c.l.b16 %v413
        %v453 = vunpack.c.l.b16 %v414
        %v454 = vunpack.c.l.b16 %v415
        %v455 = vunpack.c.l.b16 %v416
        %v456 = vunpack.c.l.b16 %v417
        %v457 = vunpack.c.l.b16 %v418
        %v458 = vunpack.c.l.b16 %v419
        %v459 = vunpack.c.l.b16 %v420
        %v460 = vunpack.c.l.b16 %v421
        %v461 = vunpack.c.l.b16 %v422
        %v462 = vunpack.c.l.b16 %v423
        %v463 = vunpack.c.l.b16 %v424
        %v464 = vunpack.c.l.b16 %v425
        %v465 = vpack.c.b16 %v450, %v449
        %v466 = vpack.c.b16 %v452, %v451
        %v467 = vpack.c.b16 %v454, %v453
        %v468 = vpack.c.b16 %v456, %v455
        %v469 = vpack.c.b16 %v458, %v457
        %v470 = vpack.c.b16 %v460, %v459
        %v471 = vpack.c.b16 %v462, %v461
        %v472 = vpack.c.b16 %v464, %v463
        %481 = vmatprep.subr.bf16.mxu0 0
        %482 = vmatpush1.bf16.msra.mxu0 %v465
        %483 = vmatprep.subr.bf16.mxu0 0
        %484 = vmatpush1.bf16.msra.mxu0 %v466
        %485 = vmatprep.subr.bf16.mxu0 0
        %486 = vmatpush1.bf16.msra.mxu0 %v467
        %487 = vmatprep.subr.bf16.mxu0 0
        %488 = vmatpush1.bf16.msra.mxu0 %v468
        %489 = vmatprep.subr.bf16.mxu0 0
        %490 = vmatpush1.bf16.msra.mxu0 %v469
        %491 = vmatprep.subr.bf16.mxu0 0
        %492 = vmatpush1.bf16.msra.mxu0 %v470
        %493 = vmatprep.subr.bf16.mxu0 0
        %494 = vmatpush1.bf16.msra.mxu0 %v471
        %495 = vmatprep.subr.bf16.mxu0 0
        %496 = vmatpush1.bf16.msra.mxu0 %v472
        %497 = vmatprep.subr.bf16.mxu0 0
        %498 = vmatpush1.bf16.msra.mxu0 0
        %499 = vmatprep.subr.bf16.mxu0 0
        %500 = vmatpush1.bf16.msra.mxu0 0
        %501 = vmatprep.subr.bf16.mxu0 0
        %502 = vmatpush1.bf16.msra.mxu0 0
        %503 = vmatprep.subr.bf16.mxu0 0
        %504 = vmatpush1.bf16.msra.mxu0 0
        %505 = vmatprep.subr.bf16.mxu0 0
        %506 = vmatpush1.bf16.msra.mxu0 0
        %507 = vmatprep.subr.bf16.mxu0 0
        %508 = vmatpush1.bf16.msra.mxu0 0
        %509 = vmatprep.subr.bf16.mxu0 0
        %510 = vmatpush1.bf16.msra.mxu0 0
        %511 = vmatprep.subr.bf16.mxu0 0
        %512 = vmatpush1.bf16.msra.mxu0 0
        %513 = vmatprep.mubr.bf16.mxu0 0
        %514 = vmatmul.mubr.bf16.gmra.mrb[0].mxu0 %v409
        %v515 = vpop.f32.mrb[0].mxu0
        %v516 = vadd.f32 %v431, %v515
        %v517 = vpop.f32.mrb[0].mxu0
        %v518 = vpop.f32.mrb[0].mxu0
        %v519 = vpop.f32.mrb[0].mxu0
        %520 = vdwg.mxu0
        %v521 = vmax.f32 %v516, 0.0
        %v522 = vpack.c.bf16 %v521, %v521
        %v523 = vld [vmem:[#allocation7] sm:$0xf]
        %v524 = vld [vmem:[#allocation7 + $0x4] sm:$0xf]
        %v525 = vld [vmem:[#allocation7 + $0x8] sm:$0xf]
        %v526 = vld [vmem:[#allocation7 + $0xc] sm:$0xf]
        %v527 = vld [vmem:[#allocation7 + $0x10] sm:$0xf]
        %v528 = vld [vmem:[#allocation7 + $0x14] sm:$0xf]
        %v529 = vld [vmem:[#allocation7 + $0x18] sm:$0xf]
        %v530 = vld [vmem:[#allocation7 + $0x1c] sm:$0xf]
        %v531 = vld [vmem:[#allocation7 + $0x20] sm:$0xf]
        %v532 = vld [vmem:[#allocation7 + $0x24] sm:$0xf]
        %v533 = vld [vmem:[#allocation7 + $0x28] sm:$0xf]
        %v534 = vld [vmem:[#allocation7 + $0x2c] sm:$0xf]
        %v535 = vld [vmem:[#allocation7 + $0x30] sm:$0xf]
        %v536 = vld [vmem:[#allocation7 + $0x34] sm:$0xf]
        %v537 = vld [vmem:[#allocation7 + $0x38] sm:$0xf]
        %v538 = vld [vmem:[#allocation7 + $0x3c] sm:$0xf]
        %v539 = vld [vmem:[%s6] sm:$0x1]
        %v541 = vlaneseq
        %v542 = vshrl.u32 %v541, 7
        %v543 = vsub.s32 0, %v542
        %v544 = vrot.slane %v539, %v543
        %v562 = vunpack.c.l.b16 %v523
        %v563 = vunpack.c.l.b16 %v524
        %v564 = vunpack.c.l.b16 %v525
        %v565 = vunpack.c.l.b16 %v526
        %v566 = vunpack.c.l.b16 %v527
        %v567 = vunpack.c.l.b16 %v528
        %v568 = vunpack.c.l.b16 %v529
        %v569 = vunpack.c.l.b16 %v530
        %v570 = vunpack.c.l.b16 %v531
        %v571 = vunpack.c.l.b16 %v532
        %v572 = vunpack.c.l.b16 %v533
        %v573 = vunpack.c.l.b16 %v534
        %v574 = vunpack.c.l.b16 %v535
        %v575 = vunpack.c.l.b16 %v536
        %v576 = vunpack.c.l.b16 %v537
        %v577 = vunpack.c.l.b16 %v538
        %v578 = vpack.c.b16 %v563, %v562
        %v579 = vpack.c.b16 %v565, %v564
        %v580 = vpack.c.b16 %v567, %v566
        %v581 = vpack.c.b16 %v569, %v568
        %v582 = vpack.c.b16 %v571, %v570
        %v583 = vpack.c.b16 %v573, %v572
        %v584 = vpack.c.b16 %v575, %v574
        %v585 = vpack.c.b16 %v577, %v576
        %594 = vmatprep.subr.bf16.mxu0 0
        %595 = vmatpush1.bf16.msra.mxu0 %v578
        %596 = vmatprep.subr.bf16.mxu0 0
        %597 = vmatpush1.bf16.msra.mxu0 %v579
        %598 = vmatprep.subr.bf16.mxu0 0
        %599 = vmatpush1.bf16.msra.mxu0 %v580
        %600 = vmatprep.subr.bf16.mxu0 0
        %601 = vmatpush1.bf16.msra.mxu0 %v581
        %602 = vmatprep.subr.bf16.mxu0 0
        %603 = vmatpush1.bf16.msra.mxu0 %v582
        %604 = vmatprep.subr.bf16.mxu0 0
        %605 = vmatpush1.bf16.msra.mxu0 %v583
        %606 = vmatprep.subr.bf16.mxu0 0
        %607 = vmatpush1.bf16.msra.mxu0 %v584
        %608 = vmatprep.subr.bf16.mxu0 0
        %609 = vmatpush1.bf16.msra.mxu0 %v585
        %610 = vmatprep.subr.bf16.mxu0 0
        %611 = vmatpush1.bf16.msra.mxu0 0
        %612 = vmatprep.subr.bf16.mxu0 0
        %613 = vmatpush1.bf16.msra.mxu0 0
        %614 = vmatprep.subr.bf16.mxu0 0
        %615 = vmatpush1.bf16.msra.mxu0 0
        %616 = vmatprep.subr.bf16.mxu0 0
        %617 = vmatpush1.bf16.msra.mxu0 0
        %618 = vmatprep.subr.bf16.mxu0 0
        %619 = vmatpush1.bf16.msra.mxu0 0
        %620 = vmatprep.subr.bf16.mxu0 0
        %621 = vmatpush1.bf16.msra.mxu0 0
        %622 = vmatprep.subr.bf16.mxu0 0
        %623 = vmatpush1.bf16.msra.mxu0 0
        %624 = vmatprep.subr.bf16.mxu0 0
        %625 = vmatpush1.bf16.msra.mxu0 0
        %626 = vmatprep.mubr.bf16.mxu0 0
        %627 = vmatmul.mubr.bf16.gmra.mrb[0].mxu0 %v522
        %v628 = vpop.f32.mrb[0].mxu0
        %v629 = vadd.f32 %v544, %v628
        %v630 = vpop.f32.mrb[0].mxu0
        %v631 = vpop.f32.mrb[0].mxu0
        %v632 = vpop.f32.mrb[0].mxu0
        %633 = vdwg.mxu0
        %634 = vst [vmem:[%s337] sm:$0xff] %v629
        %p635 = scmp.lt.s32.totalorder %s23, 1
        %s636 = scalar_select %p635, %s23, 1
        %s637 = smul.addr %s636, 8
        %s638 = scalar_lea.vmem %s7, %s637
        // Predicated region
        $region65: #{_lambda_.1} parent=47 // pred_check
          %p639 = pneg %p193
        $region66: #{_lambda_.1} parent=47 // pred_check_branch
          %641 = sbr.rel (%p639) target = $region68
        $region67: #{_lambda_.1} parent=47 // pred_region
          _
        $region68: #{_lambda_.1} parent=47 // pred_fallthru
          _
      $region48: #{_lambda_.1} parent=5 // pred_fallthru
        _
      %p642 = scmp.le.s32.totalorder 2, %s18
      // Predicated region
      $region69: #{_lambda_.1} parent=5 // pred_check
        %p643 = pneg %p642
      $region70: #{_lambda_.1} parent=5 // pred_check_branch
        %645 = sbr.rel (%p643) target = $region72
      $region71: #{_lambda_.1} parent=5 // pred_region
        %s646 = ssub.s32 %s18, 2
        // Predicated region
        $region73: #{_lambda_.1} parent=71 // pred_check
          %p647 = pneg %p199
        $region74: #{_lambda_.1} parent=71 // pred_check_branch
          %649 = sbr.rel (%p647) target = $region76
        $region75: #{_lambda_.1} parent=71 // pred_region
          %p650 = scmp.lt.s32.totalorder %s24, 1
          %s651 = scalar_select %p650, %s24, 1
          %s652 = smul.addr %s651, 8
          %s653 = scalar_lea.vmem %s7, %s652
        $region76: #{_lambda_.1} parent=71 // pred_fallthru
          _
      $region72: #{_lambda_.1} parent=5 // pred_fallthru
        _
    $region6: #{_lambda_.1} parent=1 // loop_footer
      %s22 = sadd.s32 1, %s18
    $region7: #{_lambda_.1} parent=1 // loop_footer_branch
      %17 = sbr.rel target = $region3
    $region8: #{_lambda_.1} parent=1 // loop_exit
      _
    %654 = vsyncpa [#allocation3], 1
    %s655 = scalar_lea.sflag [#allocation3], 1
    %656 = vsyncpa %s655, 1
    %657 = vsyncpa [#allocation5], 1
    %658 = vsyncpa [#allocation8], 1

</llo_original>
